<compile_context>
chip_gen: v6e
topology: v6e:2x2x1
jax: 0.10.0
libtpu: 0.0.40
codegen_flags: <defaults>
</compile_context>

<pallas_src>
import math
import functools

import jax
import jax.numpy as jnp
from jax import lax
from jax.experimental import pallas as pl
from jax.experimental.pallas import tpu as pltpu
import numpy as np


# ---------------------------------------------------------------------------
# Kernel: one q-tile of multi-head dot-product attention with dim-0 softmax
# ---------------------------------------------------------------------------
def attention_kernel(k_ref, q_ref, wkq_ref, bkq_ref, wp_ref, bp_ref,
                     out_ref, score_ref):
    B, Lk, E = k_ref.shape
    tq = q_ref.shape[1]
    n_head, D, out_dim = wp_ref.shape
    cdt = wkq_ref.dtype                      # matmul operand dtype (f32 / bf16)

    dn_nt  = (((1,), (1,)), ((), ()))        # (M,C) x (N,C)    -> (M,N)
    dn_nn  = (((1,), (0,)), ((), ()))        # (M,C) x (C,N)    -> (M,N)
    dn_bqk = (((2,), (2,)), ((0,), (0,)))    # (B,q,D) x (B,k,D)-> (B,q,k)
    dn_bqo = (((2,), (1,)), ((0,), (0,)))    # (B,q,k) x (B,k,O)-> (B,q,O)

    # ---- fused input projections: one big MXU matmul per input -------------
    # (reshape in f32 layout first, cast operands for the MXU afterwards)
    k2d = k_ref[...].reshape(B * Lk, E).astype(cdt)
    q2d = q_ref[...].reshape(B * tq, E).astype(cdt)
    kx = lax.dot_general(k2d, wkq_ref[0], dn_nt,
                         preferred_element_type=jnp.float32) + bkq_ref[0]
    qx = lax.dot_general(q2d, wkq_ref[1], dn_nt,
                         preferred_element_type=jnp.float32) + bkq_ref[1]
    # kx: (B*Lk, n_head*D) f32,  qx: (B*tq, n_head*D) f32

    # ---- per-head lane slices: raw scores into score_ref, vproj = kx @ WpT --
    vproj = []
    for h in range(n_head):
        kx_h2d = kx[:, h * D:(h + 1) * D]                     # (B*Lk, D) f32
        qx_h2d = qx[:, h * D:(h + 1) * D]                     # (B*tq, D) f32
        kx_h = kx_h2d.reshape(B, Lk, D).astype(cdt)
        qx_h = qx_h2d.reshape(B, tq, D).astype(cdt)
        # raw dot-product scores, batched over B, written straight to output
        score_ref[h] = lax.dot_general(qx_h, kx_h, dn_bqk,
                                       preferred_element_type=jnp.float32)
        # reassociated projection: vproj_h = kx_h @ Wp_h^T   (one 2-D matmul)
        v = lax.dot_general(kx_h2d.astype(cdt), wp_ref[h], dn_nn,
                            preferred_element_type=jnp.float32)  # (B*Lk, O)
        vproj.append(v.reshape(B, Lk, out_dim).astype(cdt))

    # ---- softmax over dim 0 of the (n_head*B, q, k) tensor (PyTorch quirk) --
    # normalization is jointly over (head, batch) per (q, k) position -> f32
    s = score_ref[...]                                        # (n, B, tq, Lk)
    m = jnp.max(s, axis=(0, 1), keepdims=True)
    e = jnp.exp(s - m)
    denom = jnp.sum(e, axis=(0, 1), keepdims=True)
    score = e * pl.reciprocal(denom, approx=False)   # exact: 1 divide + bcast mul
    score_ref[...] = score

    # ---- out = bp + sum_h score_h @ vproj_h  (bias broadcast done once) -----
    acc = lax.dot_general(score[0].astype(cdt), vproj[0], dn_bqo,
                          preferred_element_type=jnp.float32)
    for h in range(1, n_head):
        acc = acc + lax.dot_general(score[h].astype(cdt), vproj[h], dn_bqo,
                                    preferred_element_type=jnp.float32)
    out_ref[...] = (acc + bp_ref[...]).astype(out_ref.dtype)
    # TODO(synk): dropout is a no-op here (module uses dropout=0 by default).


# ---------------------------------------------------------------------------
# Wrapper
# ---------------------------------------------------------------------------
def attention_pallas(k, q, params, *, n_head, hidden_dim, out_dim,
                     compute_dtype=jnp.float32, q_block=128):
    if k.ndim == 2:
        k = k[:, None, :]
    if q.ndim == 2:
        q = q[:, None, :]
    B, Lk, E = k.shape
    Lq = q.shape[1]
    D = hidden_dim
    nD = n_head * D

    wk, bk, wq, bq, wp, bp = params   # PyTorch nn.Linear layouts: (out, in)

    # Pack parameters: one weight blob for w_k|w_q, one bias blob, per-head
    # proj weight pre-transposed so wp3[h] = Wp[:, h*D:(h+1)*D].T  -> (D, O).
    wkq = jnp.stack([wk, wq], axis=0).astype(compute_dtype)            # (2,nD,E)
    bkq = jnp.stack([bk, bq], axis=0).reshape(2, 1, nD).astype(jnp.float32)
    wp3 = wp.reshape(out_dim, n_head, D).transpose(1, 2, 0).astype(compute_dtype)
    bp2 = bp.reshape(1, out_dim).astype(jnp.float32)

    # q-tile size for the Lq grid axis (toy Lq=8 -> single tile).
    tq = q_block if (Lq % q_block == 0) else Lq
    grid = (Lq // tq,)

    out, score4 = pl.pallas_call(
        attention_kernel,
        out_shape=(
            jax.ShapeDtypeStruct((B, Lq, out_dim), jnp.float32),
            jax.ShapeDtypeStruct((n_head, B, Lq, Lk), jnp.float32),
        ),
        grid=grid,
        in_specs=[
            pl.BlockSpec((B, Lk, E), lambda i: (0, 0, 0)),            # k (full)
            pl.BlockSpec((B, tq, E), lambda i: (0, i, 0)),            # q (Lq tile)
            pl.BlockSpec((2, nD, E), lambda i: (0, 0, 0)),            # w_k | w_q
            pl.BlockSpec((2, 1, nD), lambda i: (0, 0, 0)),            # b_k | b_q
            pl.BlockSpec((n_head, D, out_dim), lambda i: (0, 0, 0)),  # proj W^T
            pl.BlockSpec((1, out_dim), lambda i: (0, 0)),             # proj bias
        ],
        out_specs=(
            pl.BlockSpec((B, tq, out_dim), lambda i: (0, i, 0)),
            pl.BlockSpec((n_head, B, tq, Lk), lambda i: (0, 0, i, 0)),
        ),
        compiler_params=pltpu.CompilerParams(
            # Lq tiles are independent -> shard across v7x's 2 TensorCores.
            dimension_semantics=("parallel",),
            # Budget for v7x's 64 MiB physical / 32 MiB scoped-default VMEM.
            vmem_limit_bytes=32 * 1024 * 1024),
    )(k, q, wkq, bkq, wp3, bp2)

    # PyTorch returns score with shape (n_head * mb, q_len, k_len), head-major.
    score = score4.reshape(n_head * B, Lq, Lk)
    return out, score


# ---------------------------------------------------------------------------
# Pure-JAX reference (direct transcription of the PyTorch forward)
# ---------------------------------------------------------------------------
def attention_ref(k, q, params, *, n_head, hidden_dim, out_dim):
    wk, bk, wq, bq, wp, bp = params
    B, Lk, E = k.shape
    Lq = q.shape[1]
    D = hidden_dim

    kx = k @ wk.T + bk                                     # (B, Lk, n*D)
    kx = kx.reshape(B, Lk, n_head, D).transpose(2, 0, 1, 3).reshape(-1, Lk, D)
    qx = q @ wq.T + bq
    qx = qx.reshape(B, Lq, n_head, D).transpose(2, 0, 1, 3).reshape(-1, Lq, D)

    score = jnp.einsum('bqd,bkd->bqk', qx, kx)             # dot_product
    score = jax.nn.softmax(score, axis=0)                  # dim=0 quirk
    out = jnp.einsum('bqk,bkd->bqd', score, kx)
    out = jnp.concatenate(jnp.split(out, n_head, axis=0), axis=-1)
    out = out @ wp.T + bp
    return out, score


# ---------------------------------------------------------------------------
if __name__ == "__main__":
    B, Lk, Lq = 2, 8, 8
    embed_dim = 32
    n_head = 2
    hidden_dim = embed_dim // n_head        # default in __init__
    out_dim = embed_dim                     # default in __init__

    key = jax.random.PRNGKey(0)
    keys = jax.random.split(key, 8)
    k_in = jax.random.normal(keys[0], (B, Lk, embed_dim), jnp.float32)
    q_in = jax.random.normal(keys[1], (B, Lq, embed_dim), jnp.float32)

    # Deterministic parameter init (PyTorch nn.Linear layouts: (out, in)).
    def lin_init(kw, kb, fan_in, fan_out):
        bound = 1.0 / math.sqrt(fan_in)
        w = jax.random.uniform(kw, (fan_out, fan_in), jnp.float32, -bound, bound)
        b = jax.random.uniform(kb, (fan_out,), jnp.float32, -bound, bound)
        return w, b

    wk, bk = lin_init(keys[2], keys[3], embed_dim, n_head * hidden_dim)
    wq, bq = lin_init(keys[4], keys[5], embed_dim, n_head * hidden_dim)
    wp, bp = lin_init(keys[6], keys[7], n_head * hidden_dim, out_dim)
    params = (wk, bk, wq, bq, wp, bp)

    ref_out, ref_score = attention_ref(k_in, q_in, params, n_head=n_head,
                                       hidden_dim=hidden_dim, out_dim=out_dim)

    # f32 operands: exact check against the PyTorch-equivalent reference.
    run_f32 = functools.partial(attention_pallas, n_head=n_head,
                                hidden_dim=hidden_dim, out_dim=out_dim,
                                compute_dtype=jnp.float32)
    out, score = run_f32(k_in, q_in, params)
    jax.block_until_ready((out, score))
    np.testing.assert_allclose(np.asarray(out), np.asarray(ref_out),
                               rtol=1e-4, atol=1e-5)
    np.testing.assert_allclose(np.asarray(score), np.asarray(ref_score),
                               rtol=1e-4, atol=1e-5)

    # bf16 matmul-operand mode (v6e/v7x MXU fast path); softmax / score output
    # stay f32.  Loose tolerances: operands are quantized to bf16.
    run_bf16 = functools.partial(attention_pallas, n_head=n_head,
                                 hidden_dim=hidden_dim, out_dim=out_dim,
                                 compute_dtype=jnp.bfloat16)
    out_bf, score_bf = run_bf16(k_in, q_in, params)
    jax.block_until_ready((out_bf, score_bf))
    np.testing.assert_allclose(np.asarray(out_bf), np.asarray(ref_out),
                               rtol=1e-1, atol=1e-1)
    np.testing.assert_allclose(np.asarray(score_bf), np.asarray(ref_score),
                               rtol=1e-1, atol=1e-1)

    print("KERNEL_OK")
</pallas_src>

<mosaic_0001>
module attributes {stable_mosaic.version = 11 : i64} {
  func.func @attention_kernel(%arg0: i32, %arg1: memref<2x8x32xf32, #tpu.memory_space<vmem>>, %arg2: memref<2x8x32xf32, #tpu.memory_space<vmem>>, %arg3: memref<2x32x32xf32, #tpu.memory_space<vmem>>, %arg4: memref<2x1x32xf32, #tpu.memory_space<vmem>>, %arg5: memref<2x16x32xf32, #tpu.memory_space<vmem>>, %arg6: memref<1x32xf32, #tpu.memory_space<vmem>>, %arg7: memref<2x8x32xf32, #tpu.memory_space<vmem>>, %arg8: memref<2x2x8x8xf32, #tpu.memory_space<vmem>>) attributes {dimension_semantics = [#tpu.dimension_semantics<parallel>], iteration_bounds = array<i64: 1>, scalar_prefetch = 0 : i64, scratch_operands = 0 : i64, tpu.core_type = #tpu.core_type<tc>, window_params = [{pipeline_mode = #tpu.pipeline_mode<synchronous>, transform_indices = @transform_0, window_bounds = array<i64: 2, 8, 32>}, {transform_indices = @transform_1, window_bounds = array<i64: 2, 8, 32>}, {pipeline_mode = #tpu.pipeline_mode<synchronous>, transform_indices = @transform_2, window_bounds = array<i64: 2, 32, 32>}, {pipeline_mode = #tpu.pipeline_mode<synchronous>, transform_indices = @transform_3, window_bounds = array<i64: 2, 1, 32>}, {pipeline_mode = #tpu.pipeline_mode<synchronous>, transform_indices = @transform_4, window_bounds = array<i64: 2, 16, 32>}, {pipeline_mode = #tpu.pipeline_mode<synchronous>, transform_indices = @transform_5, window_bounds = array<i64: 1, 32>}, {transform_indices = @transform_6, window_bounds = array<i64: 2, 8, 32>}, {transform_indices = @transform_7, window_bounds = array<i64: 2, 2, 8, 8>}]} {
    %c0 = arith.constant 0 : index
    %c0_0 = arith.constant 0 : index
    %c0_1 = arith.constant 0 : index
    %0 = vector.load %arg1[%c0, %c0_0, %c0_1] : memref<2x8x32xf32, #tpu.memory_space<vmem>>, vector<2x8x32xf32>
    %1 = vector.shape_cast %0 : vector<2x8x32xf32> to vector<16x32xf32>
    %c0_2 = arith.constant 0 : index
    %c0_3 = arith.constant 0 : index
    %c0_4 = arith.constant 0 : index
    %2 = vector.load %arg2[%c0_2, %c0_3, %c0_4] : memref<2x8x32xf32, #tpu.memory_space<vmem>>, vector<2x8x32xf32>
    %3 = vector.shape_cast %2 : vector<2x8x32xf32> to vector<16x32xf32>
    %c0_5 = arith.constant 0 : index
    %c0_6 = arith.constant 0 : index
    %c0_7 = arith.constant 0 : index
    %4 = vector.load %arg3[%c0_5, %c0_6, %c0_7] : memref<2x32x32xf32, #tpu.memory_space<vmem>>, vector<1x32x32xf32>
    %5 = vector.shape_cast %4 : vector<1x32x32xf32> to vector<32x32xf32>
    %cst = arith.constant dense<0.000000e+00> : vector<16x32xf32>
    %6 = tpu.matmul %1, %5, %cst {dimension_numbers = #tpu.dot_dimension_numbers<[1], [1], [0], [0], [0, 0, 1, 0], [], []>} : vector<16x32xf32>, vector<32x32xf32>, vector<16x32xf32> -> vector<16x32xf32>
    %c0_8 = arith.constant 0 : index
    %c0_9 = arith.constant 0 : index
    %c0_10 = arith.constant 0 : index
    %7 = vector.load %arg4[%c0_8, %c0_9, %c0_10] : memref<2x1x32xf32, #tpu.memory_space<vmem>>, vector<1x1x32xf32>
    %8 = vector.shape_cast %7 : vector<1x1x32xf32> to vector<1x32xf32>
    %9 = vector.broadcast %8 : vector<1x32xf32> to vector<16x32xf32>
    %10 = arith.addf %6, %9 : vector<16x32xf32>
    %c1 = arith.constant 1 : index
    %c0_11 = arith.constant 0 : index
    %c0_12 = arith.constant 0 : index
    %11 = vector.load %arg3[%c1, %c0_11, %c0_12] : memref<2x32x32xf32, #tpu.memory_space<vmem>>, vector<1x32x32xf32>
    %12 = vector.shape_cast %11 : vector<1x32x32xf32> to vector<32x32xf32>
    %cst_13 = arith.constant dense<0.000000e+00> : vector<16x32xf32>
    %13 = tpu.matmul %3, %12, %cst_13 {dimension_numbers = #tpu.dot_dimension_numbers<[1], [1], [0], [0], [0, 0, 1, 0], [], []>} : vector<16x32xf32>, vector<32x32xf32>, vector<16x32xf32> -> vector<16x32xf32>
    %c1_14 = arith.constant 1 : index
    %c0_15 = arith.constant 0 : index
    %c0_16 = arith.constant 0 : index
    %14 = vector.load %arg4[%c1_14, %c0_15, %c0_16] : memref<2x1x32xf32, #tpu.memory_space<vmem>>, vector<1x1x32xf32>
    %15 = vector.shape_cast %14 : vector<1x1x32xf32> to vector<1x32xf32>
    %16 = vector.broadcast %15 : vector<1x32xf32> to vector<16x32xf32>
    %17 = arith.addf %13, %16 : vector<16x32xf32>
    %18 = vector.extract_strided_slice %10 {offsets = [0, 0], sizes = [16, 16], strides = [1, 1]} : vector<16x32xf32> to vector<16x16xf32>
    %19 = vector.extract_strided_slice %17 {offsets = [0, 0], sizes = [16, 16], strides = [1, 1]} : vector<16x32xf32> to vector<16x16xf32>
    %20 = vector.shape_cast %18 : vector<16x16xf32> to vector<2x8x16xf32>
    %21 = vector.shape_cast %19 : vector<16x16xf32> to vector<2x8x16xf32>
    %cst_17 = arith.constant dense<0.000000e+00> : vector<2x8x8xf32>
    %22 = tpu.matmul %21, %20, %cst_17 {dimension_numbers = #tpu.dot_dimension_numbers<[2], [2], [1], [1], [0, 0, 0, 1, 1, 1], [0], [0]>} : vector<2x8x16xf32>, vector<2x8x16xf32>, vector<2x8x8xf32> -> vector<2x8x8xf32>
    %c0_18 = arith.constant 0 : index
    %c0_19 = arith.constant 0 : index
    %c0_20 = arith.constant 0 : index
    %c0_21 = arith.constant 0 : index
    %23 = vector.load %arg8[%c0_18, %c0_19, %c0_20, %c0_21] : memref<2x2x8x8xf32, #tpu.memory_space<vmem>>, vector<1x2x8x8xf32>
    %24 = vector.shape_cast %23 : vector<1x2x8x8xf32> to vector<2x8x8xf32>
    %25 = vector.shape_cast %22 : vector<2x8x8xf32> to vector<1x2x8x8xf32>
    tpu.vector_store %arg8[%c0_18, %c0_19, %c0_20, %c0_21], %25 {strides = array<i32>} : memref<2x2x8x8xf32, #tpu.memory_space<vmem>>, vector<1x2x8x8xf32>,
    %c0_22 = arith.constant 0 : index
    %c0_23 = arith.constant 0 : index
    %c0_24 = arith.constant 0 : index
    %26 = vector.load %arg5[%c0_22, %c0_23, %c0_24] : memref<2x16x32xf32, #tpu.memory_space<vmem>>, vector<1x16x32xf32>
    %27 = vector.shape_cast %26 : vector<1x16x32xf32> to vector<16x32xf32>
    %cst_25 = arith.constant dense<0.000000e+00> : vector<16x32xf32>
    %28 = tpu.matmul %18, %27, %cst_25 {dimension_numbers = #tpu.dot_dimension_numbers<[1], [0], [0], [1], [0, 0, 1, 1], [], []>} : vector<16x16xf32>, vector<16x32xf32>, vector<16x32xf32> -> vector<16x32xf32>
    %29 = vector.shape_cast %28 : vector<16x32xf32> to vector<2x8x32xf32>
    %30 = vector.extract_strided_slice %10 {offsets = [0, 16], sizes = [16, 16], strides = [1, 1]} : vector<16x32xf32> to vector<16x16xf32>
    %31 = vector.extract_strided_slice %17 {offsets = [0, 16], sizes = [16, 16], strides = [1, 1]} : vector<16x32xf32> to vector<16x16xf32>
    %32 = vector.shape_cast %30 : vector<16x16xf32> to vector<2x8x16xf32>
    %33 = vector.shape_cast %31 : vector<16x16xf32> to vector<2x8x16xf32>
    %cst_26 = arith.constant dense<0.000000e+00> : vector<2x8x8xf32>
    %34 = tpu.matmul %33, %32, %cst_26 {dimension_numbers = #tpu.dot_dimension_numbers<[2], [2], [1], [1], [0, 0, 0, 1, 1, 1], [0], [0]>} : vector<2x8x16xf32>, vector<2x8x16xf32>, vector<2x8x8xf32> -> vector<2x8x8xf32>
    %c1_27 = arith.constant 1 : index
    %c0_28 = arith.constant 0 : index
    %c0_29 = arith.constant 0 : index
    %c0_30 = arith.constant 0 : index
    %35 = vector.load %arg8[%c1_27, %c0_28, %c0_29, %c0_30] : memref<2x2x8x8xf32, #tpu.memory_space<vmem>>, vector<1x2x8x8xf32>
    %36 = vector.shape_cast %35 : vector<1x2x8x8xf32> to vector<2x8x8xf32>
    %37 = vector.shape_cast %34 : vector<2x8x8xf32> to vector<1x2x8x8xf32>
    tpu.vector_store %arg8[%c1_27, %c0_28, %c0_29, %c0_30], %37 {strides = array<i32>} : memref<2x2x8x8xf32, #tpu.memory_space<vmem>>, vector<1x2x8x8xf32>,
    %c1_31 = arith.constant 1 : index
    %c0_32 = arith.constant 0 : index
    %c0_33 = arith.constant 0 : index
    %38 = vector.load %arg5[%c1_31, %c0_32, %c0_33] : memref<2x16x32xf32, #tpu.memory_space<vmem>>, vector<1x16x32xf32>
    %39 = vector.shape_cast %38 : vector<1x16x32xf32> to vector<16x32xf32>
    %cst_34 = arith.constant dense<0.000000e+00> : vector<16x32xf32>
    %40 = tpu.matmul %30, %39, %cst_34 {dimension_numbers = #tpu.dot_dimension_numbers<[1], [0], [0], [1], [0, 0, 1, 1], [], []>} : vector<16x16xf32>, vector<16x32xf32>, vector<16x32xf32> -> vector<16x32xf32>
    %41 = vector.shape_cast %40 : vector<16x32xf32> to vector<2x8x32xf32>
    %c0_35 = arith.constant 0 : index
    %c0_36 = arith.constant 0 : index
    %c0_37 = arith.constant 0 : index
    %c0_38 = arith.constant 0 : index
    %42 = vector.load %arg8[%c0_35, %c0_36, %c0_37, %c0_38] : memref<2x2x8x8xf32, #tpu.memory_space<vmem>>, vector<2x2x8x8xf32>
    %cst_39 = arith.constant dense<0xFF800000> : vector<8x8xf32>
    %43 = vector.multi_reduction <maximumf>, %42, %cst_39 [0, 1] : vector<2x2x8x8xf32> to vector<8x8xf32>
    %44 = vector.shape_cast %43 : vector<8x8xf32> to vector<1x1x8x8xf32>
    %45 = vector.broadcast %44 : vector<1x1x8x8xf32> to vector<2x2x8x8xf32>
    %46 = arith.subf %42, %45 : vector<2x2x8x8xf32>
    %47 = math.exp %46 : vector<2x2x8x8xf32>
    %cst_40 = arith.constant dense<0.000000e+00> : vector<8x8xf32>
    %48 = vector.multi_reduction <add>, %47, %cst_40 [0, 1] : vector<2x2x8x8xf32> to vector<8x8xf32>
    %49 = vector.shape_cast %48 : vector<8x8xf32> to vector<1x1x8x8xf32>
    %50 = tpu.reciprocal %49 : vector<1x1x8x8xf32> -> vector<1x1x8x8xf32>
    %51 = vector.broadcast %50 : vector<1x1x8x8xf32> to vector<2x2x8x8xf32>
    %52 = arith.mulf %47, %51 : vector<2x2x8x8xf32>
    %c0_41 = arith.constant 0 : index
    %c0_42 = arith.constant 0 : index
    %c0_43 = arith.constant 0 : index
    %c0_44 = arith.constant 0 : index
    %53 = vector.load %arg8[%c0_41, %c0_42, %c0_43, %c0_44] : memref<2x2x8x8xf32, #tpu.memory_space<vmem>>, vector<2x2x8x8xf32>
    tpu.vector_store %arg8[%c0_41, %c0_42, %c0_43, %c0_44], %52 {strides = array<i32>} : memref<2x2x8x8xf32, #tpu.memory_space<vmem>>, vector<2x2x8x8xf32>,
    %54 = vector.extract_strided_slice %52 {offsets = [0, 0, 0, 0], sizes = [1, 2, 8, 8], strides = [1, 1, 1, 1]} : vector<2x2x8x8xf32> to vector<1x2x8x8xf32>
    %55 = vector.shape_cast %54 : vector<1x2x8x8xf32> to vector<2x8x8xf32>
    %cst_45 = arith.constant dense<0.000000e+00> : vector<2x8x32xf32>
    %56 = tpu.matmul %55, %29, %cst_45 {dimension_numbers = #tpu.dot_dimension_numbers<[2], [1], [1], [2], [0, 0, 0, 1, 1, 2], [0], [0]>} : vector<2x8x8xf32>, vector<2x8x32xf32>, vector<2x8x32xf32> -> vector<2x8x32xf32>
    %57 = vector.extract_strided_slice %52 {offsets = [1, 0, 0, 0], sizes = [1, 2, 8, 8], strides = [1, 1, 1, 1]} : vector<2x2x8x8xf32> to vector<1x2x8x8xf32>
    %58 = vector.shape_cast %57 : vector<1x2x8x8xf32> to vector<2x8x8xf32>
    %cst_46 = arith.constant dense<0.000000e+00> : vector<2x8x32xf32>
    %59 = tpu.matmul %58, %41, %cst_46 {dimension_numbers = #tpu.dot_dimension_numbers<[2], [1], [1], [2], [0, 0, 0, 1, 1, 2], [0], [0]>} : vector<2x8x8xf32>, vector<2x8x32xf32>, vector<2x8x32xf32> -> vector<2x8x32xf32>
    %60 = arith.addf %56, %59 : vector<2x8x32xf32>
    %c0_47 = arith.constant 0 : index
    %c0_48 = arith.constant 0 : index
    %61 = vector.load %arg6[%c0_47, %c0_48] : memref<1x32xf32, #tpu.memory_space<vmem>>, vector<1x32xf32>
    %62 = vector.shape_cast %61 : vector<1x32xf32> to vector<1x1x32xf32>
    %63 = vector.broadcast %62 : vector<1x1x32xf32> to vector<2x8x32xf32>
    %64 = arith.addf %60, %63 : vector<2x8x32xf32>
    %c0_49 = arith.constant 0 : index
    %c0_50 = arith.constant 0 : index
    %c0_51 = arith.constant 0 : index
    %65 = vector.load %arg7[%c0_49, %c0_50, %c0_51] : memref<2x8x32xf32, #tpu.memory_space<vmem>>, vector<2x8x32xf32>
    tpu.vector_store %arg7[%c0_49, %c0_50, %c0_51], %64 {strides = array<i32>} : memref<2x8x32xf32, #tpu.memory_space<vmem>>, vector<2x8x32xf32>,
    return
  }
  func.func @transform_0(%arg0: i32) -> (i32, i32, i32) {
    %c0_i32 = arith.constant 0 : i32
    %c0_i32_0 = arith.constant 0 : i32
    %c0_i32_1 = arith.constant 0 : i32
    %c0_i32_2 = arith.constant 0 : i32
    return %c0_i32, %c0_i32_0, %c0_i32_1 : i32, i32, i32
  }
  func.func @transform_1(%arg0: i32) -> (i32, i32, i32) {
    %c0_i32 = arith.constant 0 : i32
    %c0_i32_0 = arith.constant 0 : i32
    %c0_i32_1 = arith.constant 0 : i32
    return %c0_i32, %arg0, %c0_i32_0 : i32, i32, i32
  }
  func.func @transform_2(%arg0: i32) -> (i32, i32, i32) {
    %c0_i32 = arith.constant 0 : i32
    %c0_i32_0 = arith.constant 0 : i32
    %c0_i32_1 = arith.constant 0 : i32
    %c0_i32_2 = arith.constant 0 : i32
    return %c0_i32, %c0_i32_0, %c0_i32_1 : i32, i32, i32
  }
  func.func @transform_3(%arg0: i32) -> (i32, i32, i32) {
    %c0_i32 = arith.constant 0 : i32
    %c0_i32_0 = arith.constant 0 : i32
    %c0_i32_1 = arith.constant 0 : i32
    %c0_i32_2 = arith.constant 0 : i32
    return %c0_i32, %c0_i32_0, %c0_i32_1 : i32, i32, i32
  }
  func.func @transform_4(%arg0: i32) -> (i32, i32, i32) {
    %c0_i32 = arith.constant 0 : i32
    %c0_i32_0 = arith.constant 0 : i32
    %c0_i32_1 = arith.constant 0 : i32
    %c0_i32_2 = arith.constant 0 : i32
    return %c0_i32, %c0_i32_0, %c0_i32_1 : i32, i32, i32
  }
  func.func @transform_5(%arg0: i32) -> (i32, i32) {
    %c0_i32 = arith.constant 0 : i32
    %c0_i32_0 = arith.constant 0 : i32
    %c0_i32_1 = arith.constant 0 : i32
    return %c0_i32, %c0_i32_0 : i32, i32
  }
  func.func @transform_6(%arg0: i32) -> (i32, i32, i32) {
    %c0_i32 = arith.constant 0 : i32
    %c0_i32_0 = arith.constant 0 : i32
    %c0_i32_1 = arith.constant 0 : i32
    return %c0_i32, %arg0, %c0_i32_0 : i32, i32, i32
  }
  func.func @transform_7(%arg0: i32) -> (i32, i32, i32, i32) {
    %c0_i32 = arith.constant 0 : i32
    %c0_i32_0 = arith.constant 0 : i32
    %c0_i32_1 = arith.constant 0 : i32
    %c0_i32_2 = arith.constant 0 : i32
    return %c0_i32, %c0_i32_0, %arg0, %c0_i32_1 : i32, i32, i32, i32
  }
}

</mosaic_0001>

<llo_original>
// kernel: tpu_custom_call.1
$region0: #{tpu_custom_call.1}
  #allocation0 [shape = 'u32[]', space=smem, size = 0x4, offset = 0x4, fixed_abs, tag = 'smem constant byte address 0x4 - core index']
  #allocation1 [shape = 'u32[144,128]{1,0:T(1,128)}', space=vmem, size = 0x12000, scoped, tag = 'internal scratch']
  %s0 = inlined_call_operand.hbm [shape: f32[2,8,32], index: 0, kind: input, shape index: {}]
  %s1 = inlined_call_operand.hbm [shape: f32[2,8,32], index: 1, kind: input, shape index: {}]
  %s2 = inlined_call_operand.hbm [shape: f32[2,32,32], index: 2, kind: input, shape index: {}]
  %s3 = inlined_call_operand.vmem [shape: f32[2,1,32], index: 3, kind: input, shape index: {}]
  %s4 = inlined_call_operand.hbm [shape: f32[2,16,32], index: 4, kind: input, shape index: {}]
  %s5 = inlined_call_operand.vmem [shape: f32[1,32], index: 5, kind: input, shape index: {}]
  %s6 = inlined_call_operand.hbm [shape: f32[2,8,32], index: 6, kind: output, shape index: {0}]
  %s7 = inlined_call_operand.hbm [shape: f32[2,2,8,8], index: 7, kind: output, shape index: {1}]
  %8 = xla_tuple %s6, %s7
  %s9 = sld [smem:[#allocation0]]
  $region58: #{tpu_custom_call.1} parent=0
    _
  %s11 = ssub.s32 1, %s9
  %s12 = scalar_select 0, %s11, %s9
  $region1: #{tpu_custom_call.1} parent=0
    #allocation2 [shape = 'u8[8192]{0}', space=vmem, size = 0x2000, scoped, tag = 'input window, operand 0, single buffered']
    #allocation3 [shape = 's32[1]{0}', space=sflag, size = 0x4, scoped, tag = 'scoped memory for tpu_custom_call.1']
    #allocation4 [shape = 's32[1]{0}', space=sflag, size = 0x4, scoped, tag = 'scoped memory for tpu_custom_call.1']
    #allocation5 [shape = 'u8[8192]{0}', space=vmem, size = 0x2000, scoped, tag = 'input window, operand 1, single buffered']
    #allocation6 [shape = 's32[1]{0}', space=sflag, size = 0x4, scoped, tag = 'scoped memory for tpu_custom_call.1']
    #allocation7 [shape = 'u8[32768]{0}', space=vmem, size = 0x8000, scoped, tag = 'input window, operand 2, single buffered']
    #allocation8 [shape = 'u8[16384]{0}', space=vmem, size = 0x4000, scoped, tag = 'input window, operand 4, single buffered']
    #allocation9 [shape = 's32[1]{0}', space=sflag, size = 0x4, scoped, tag = 'scoped memory for tpu_custom_call.1']
    #allocation10 [shape = 'u8[8192]{0}', space=vmem, size = 0x2000, scoped, tag = 'output window, operand 0, single buffered']
    #allocation11 [shape = 'u8[16384]{0}', space=vmem, size = 0x4000, scoped, tag = 'output window, operand 1, single buffered']
    #allocation12 [shape = 's32[1]{0}', space=sflag, size = 0x4, scoped, tag = 'scoped memory for tpu_custom_call.1']
    %13 = vsyncpa [#allocation3], 0
    %14 = vsyncpa [#allocation6], 0
    %15 = vsyncpa [#allocation9], 0
    %16 = vsyncpa [#allocation4], 0
    %17 = vsyncpa [#allocation12], 0
    // Predicated region
    $region2: #{tpu_custom_call.1} parent=1 // pred_check
      _
    $region3: #{tpu_custom_call.1} parent=1 // pred_check_branch
      %19 = sbr.rel (0) target = $region5
    $region4: #{tpu_custom_call.1} parent=1 // pred_region
      %s21 = ssub.s32 256, 256
      %22 = vsyncadd [#allocation3], %s21
      %s23 = sshll.u32 [#allocation2], 4
      %s24 = int_to_ptr.vmem [resolvable:$true] %s23
      %29 = dma.hbm_to_vmem [thread:$0]  %s0, 256, %s24, [#allocation3], 128, 128, 8
    $region5: #{tpu_custom_call.1} parent=1 // pred_fallthru
      _
    // Predicated region
    $region6: #{tpu_custom_call.1} parent=1 // pred_check
      _
    $region7: #{tpu_custom_call.1} parent=1 // pred_check_branch
      %31 = sbr.rel (0) target = $region9
    $region8: #{tpu_custom_call.1} parent=1 // pred_region
      %s33 = ssub.s32 256, 256
      %34 = vsyncadd [#allocation6], %s33
      %s35 = sshll.u32 [#allocation5], 4
      %s36 = int_to_ptr.vmem [resolvable:$true] %s35
      %41 = dma.hbm_to_vmem [thread:$0]  %s1, 256, %s36, [#allocation6], 128, 128, 8
    $region9: #{tpu_custom_call.1} parent=1 // pred_fallthru
      _
    // Predicated region
    $region10: #{tpu_custom_call.1} parent=1 // pred_check
      _
    $region11: #{tpu_custom_call.1} parent=1 // pred_check_branch
      %43 = sbr.rel (0) target = $region13
    $region12: #{tpu_custom_call.1} parent=1 // pred_region
      %s45 = ssub.s32 1024, 1024
      %46 = vsyncadd [#allocation6], %s45
      %s47 = sshll.u32 [#allocation7], 4
      %s48 = int_to_ptr.vmem [resolvable:$true] %s47
      %53 = dma.hbm_to_vmem [thread:$0]  %s2, 1024, %s48, [#allocation6], 128, 128, 8
    $region13: #{tpu_custom_call.1} parent=1 // pred_fallthru
      _
    // Predicated region
    $region14: #{tpu_custom_call.1} parent=1 // pred_check
      _
    $region15: #{tpu_custom_call.1} parent=1 // pred_check_branch
      %55 = sbr.rel (0) target = $region17
    $region16: #{tpu_custom_call.1} parent=1 // pred_region
      _
    $region17: #{tpu_custom_call.1} parent=1 // pred_fallthru
      _
    // Predicated region
    $region18: #{tpu_custom_call.1} parent=1 // pred_check
      _
    $region19: #{tpu_custom_call.1} parent=1 // pred_check_branch
      %57 = sbr.rel (0) target = $region21
    $region20: #{tpu_custom_call.1} parent=1 // pred_region
      %s59 = ssub.s32 512, 512
      %60 = vsyncadd [#allocation9], %s59
      %s61 = sshll.u32 [#allocation8], 4
      %s62 = int_to_ptr.vmem [resolvable:$true] %s61
      %67 = dma.hbm_to_vmem [thread:$0]  %s4, 512, %s62, [#allocation9], 128, 128, 8
    $region21: #{tpu_custom_call.1} parent=1 // pred_fallthru
      _
    // Predicated region
    $region22: #{tpu_custom_call.1} parent=1 // pred_check
      _
    $region23: #{tpu_custom_call.1} parent=1 // pred_check_branch
      %69 = sbr.rel (0) target = $region25
    $region24: #{tpu_custom_call.1} parent=1 // pred_region
      _
    $region25: #{tpu_custom_call.1} parent=1 // pred_fallthru
      _
    // Predicated region
    $region26: #{tpu_custom_call.1} parent=1 // pred_check
      _
    $region27: #{tpu_custom_call.1} parent=1 // pred_check_branch
      %71 = sbr.rel (0) target = $region29
    $region28: #{tpu_custom_call.1} parent=1 // pred_region
      %72 = dma.done [#allocation3], 256
    $region29: #{tpu_custom_call.1} parent=1 // pred_fallthru
      _
    // Predicated region
    $region30: #{tpu_custom_call.1} parent=1 // pred_check
      _
    $region31: #{tpu_custom_call.1} parent=1 // pred_check_branch
      %74 = sbr.rel (0) target = $region33
    $region32: #{tpu_custom_call.1} parent=1 // pred_region
      %75 = dma.done [#allocation6], 256
    $region33: #{tpu_custom_call.1} parent=1 // pred_fallthru
      _
    // Predicated region
    $region34: #{tpu_custom_call.1} parent=1 // pred_check
      _
    $region35: #{tpu_custom_call.1} parent=1 // pred_check_branch
      %77 = sbr.rel (0) target = $region37
    $region36: #{tpu_custom_call.1} parent=1 // pred_region
      %78 = dma.done [#allocation6], 1024
    $region37: #{tpu_custom_call.1} parent=1 // pred_fallthru
      _
    // Predicated region
    $region38: #{tpu_custom_call.1} parent=1 // pred_check
      _
    $region39: #{tpu_custom_call.1} parent=1 // pred_check_branch
      %80 = sbr.rel (0) target = $region41
    $region40: #{tpu_custom_call.1} parent=1 // pred_region
      %81 = dma.done [#allocation9], 512
    $region41: #{tpu_custom_call.1} parent=1 // pred_fallthru
      _
    %v82 = vld [vmem:[#allocation2] sm:$0xff]
    %v83 = vld [vmem:[#allocation2 + $0x8] sm:$0xff]
    %v84 = vld [vmem:[#allocation5] sm:$0xff]
    %v85 = vld [vmem:[#allocation5 + $0x8] sm:$0xff]
    %v86 = vld [vmem:[#allocation7] sm:$0xff]
    %v87 = vld [vmem:[#allocation7 + $0x8] sm:$0xff]
    %v88 = vld [vmem:[#allocation7 + $0x10] sm:$0xff]
    %v89 = vld [vmem:[#allocation7 + $0x18] sm:$0xff]
    %v90 = vld [vmem:[%s3] sm:$0x1]
    %v92 = vlaneseq
    %v93 = vshrl.u32 %v92, 7
    %v94 = vsub.s32 0, %v93
    %v95 = vrot.slane %v90, %v94
    %vm97 = vcmask 261120
    %v99 = vsel %vm97, %v82, 0
    %v102 = vsel %vm97, %v83, 0
    %v105 = vsel %vm97, %v86, 0
    %v108 = vsel %vm97, %v87, 0
    %v111 = vsel %vm97, %v88, 0
    %v114 = vsel %vm97, %v89, 0
    %116 = vmatprep.subr.mxu0 0.0
    %117 = vmatpush1.xpose.msra.mxu0 0.0
    %118 = vmatprep.subr.mxu0 0.0
    %119 = vmatpush1.xpose.msra.mxu0 0.0
    %120 = vmatprep.subr.mxu0 0.0
    %121 = vmatpush1.xpose.msra.mxu0 0.0
    %122 = vmatprep.subr.mxu0 0.0
    %123 = vmatpush1.xpose.msra.mxu0 0.0
    %124 = vmatprep.subr.mxu0 0.0
    %125 = vmatpush1.xpose.msra.mxu0 0.0
    %126 = vmatprep.subr.mxu0 0.0
    %127 = vmatpush1.xpose.msra.mxu0 0.0
    %128 = vmatprep.subr.mxu0 0.0
    %129 = vmatpush1.xpose.msra.mxu0 0.0
    %130 = vmatprep.subr.mxu0 0.0
    %131 = vmatpush1.xpose.msra.mxu0 0.0
    %132 = vmatprep.subr.mxu0 0.0
    %133 = vmatpush1.xpose.msra.mxu0 0.0
    %134 = vmatprep.subr.mxu0 0.0
    %135 = vmatpush1.xpose.msra.mxu0 0.0
    %136 = vmatprep.subr.mxu0 0.0
    %137 = vmatpush1.xpose.msra.mxu0 0.0
    %138 = vmatprep.subr.mxu0 0.0
    %139 = vmatpush1.xpose.msra.mxu0 0.0
    %140 = vmatprep.subr.mxu0 0.0
    %141 = vmatpush1.xpose.msra.mxu0 %v114
    %142 = vmatprep.subr.mxu0 0.0
    %143 = vmatpush1.xpose.msra.mxu0 %v111
    %144 = vmatprep.subr.mxu0 0.0
    %145 = vmatpush1.xpose.msra.mxu0 %v108
    %146 = vmatprep.subr.mxu0 0.0
    %147 = vmatpush1.xpose.msra.mxu0 %v105
    %148 = vmatprep.subr.mxu0 0.0
    %149 = vmatpush2.xpose.msra.mxu0 0.0
    %150 = vmatprep.subr.mxu0 0.0
    %151 = vmatpush2.xpose.msra.mxu0 0.0
    %152 = vmatprep.subr.mxu0 0.0
    %153 = vmatpush2.xpose.msra.mxu0 0.0
    %154 = vmatprep.subr.mxu0 0.0
    %155 = vmatpush2.xpose.msra.mxu0 0.0
    %156 = vmatprep.subr.mxu0 0.0
    %157 = vmatpush2.xpose.msra.mxu0 0.0
    %158 = vmatprep.subr.mxu0 0.0
    %159 = vmatpush2.xpose.msra.mxu0 0.0
    %160 = vmatprep.subr.mxu0 0.0
    %161 = vmatpush2.xpose.msra.mxu0 0.0
    %162 = vmatprep.subr.mxu0 0.0
    %163 = vmatpush2.xpose.msra.mxu0 0.0
    %164 = vmatprep.subr.mxu0 0.0
    %165 = vmatpush2.xpose.msra.mxu0 0.0
    %166 = vmatprep.subr.mxu0 0.0
    %167 = vmatpush2.xpose.msra.mxu0 0.0
    %168 = vmatprep.subr.mxu0 0.0
    %169 = vmatpush2.xpose.msra.mxu0 0.0
    %170 = vmatprep.subr.mxu0 0.0
    %171 = vmatpush2.xpose.msra.mxu0 0.0
    %172 = vmatprep.subr.mxu0 0.0
    %173 = vmatpush2.xpose.msra.mxu0 0.0
    %174 = vmatprep.subr.mxu0 0.0
    %175 = vmatpush2.xpose.msra.mxu0 0.0
    %176 = vmatprep.subr.mxu0 0.0
    %177 = vmatpush2.xpose.msra.mxu0 0.0
    %178 = vmatprep.subr.mxu0 0.0
    %179 = vmatpush2.xpose.msra.mxu0 0.0
    %180 = vmatprep.mubr.f32.mxu0 0.0
    %181 = vmatmul.mubr.f32.gmra.mxu0 %v99
    %v182 = vpop.f32.mrf.mxu0
    %v183 = vadd.f32 %v95, %v182
    %v184 = vpop.f32.mrf.mxu0
    %185 = vmatprep.mubr.f32.mxu0 0.0
    %186 = vmatmul.mubr.f32.gmra.mxu0 %v102
    %v187 = vpop.f32.mrf.mxu0
    %v188 = vadd.f32 %v95, %v187
    %v189 = vpop.f32.mrf.mxu0
    %190 = vdwg.mxu0
    %s191 = scalar_lea.vmem [#allocation7], 32
    %v192 = vld [vmem:[%s191] sm:$0xff]
    %v193 = vld [vmem:[%s191 + $0x8] sm:$0xff]
    %v194 = vld [vmem:[%s191 + $0x10] sm:$0xff]
    %v195 = vld [vmem:[%s191 + $0x18] sm:$0xff]
    %s196 = scalar_lea.vmem %s3, 1
    %v197 = vld [vmem:[%s196] sm:$0x1]
    %v199 = vlaneseq
    %v200 = vshrl.u32 %v199, 7
    %v201 = vsub.s32 0, %v200
    %v202 = vrot.slane %v197, %v201
    %v205 = vsel %vm97, %v84, 0
    %v208 = vsel %vm97, %v85, 0
    %v211 = vsel %vm97, %v192, 0
    %v214 = vsel %vm97, %v193, 0
    %v217 = vsel %vm97, %v194, 0
    %v220 = vsel %vm97, %v195, 0
    %222 = vmatprep.subr.mxu0 0.0
    %223 = vmatpush1.xpose.msra.mxu0 0.0
    %224 = vmatprep.subr.mxu0 0.0
    %225 = vmatpush1.xpose.msra.mxu0 0.0
    %226 = vmatprep.subr.mxu0 0.0
    %227 = vmatpush1.xpose.msra.mxu0 0.0
    %228 = vmatprep.subr.mxu0 0.0
    %229 = vmatpush1.xpose.msra.mxu0 0.0
    %230 = vmatprep.subr.mxu0 0.0
    %231 = vmatpush1.xpose.msra.mxu0 0.0
    %232 = vmatprep.subr.mxu0 0.0
    %233 = vmatpush1.xpose.msra.mxu0 0.0
    %234 = vmatprep.subr.mxu0 0.0
    %235 = vmatpush1.xpose.msra.mxu0 0.0
    %236 = vmatprep.subr.mxu0 0.0
    %237 = vmatpush1.xpose.msra.mxu0 0.0
    %238 = vmatprep.subr.mxu0 0.0
    %239 = vmatpush1.xpose.msra.mxu0 0.0
    %240 = vmatprep.subr.mxu0 0.0
    %241 = vmatpush1.xpose.msra.mxu0 0.0
    %242 = vmatprep.subr.mxu0 0.0
    %243 = vmatpush1.xpose.msra.mxu0 0.0
    %244 = vmatprep.subr.mxu0 0.0
    %245 = vmatpush1.xpose.msra.mxu0 0.0
    %246 = vmatprep.subr.mxu0 0.0
    %247 = vmatpush1.xpose.msra.mxu0 %v220
    %248 = vmatprep.subr.mxu0 0.0
    %249 = vmatpush1.xpose.msra.mxu0 %v217
    %250 = vmatprep.subr.mxu0 0.0
    %251 = vmatpush1.xpose.msra.mxu0 %v214
    %252 = vmatprep.subr.mxu0 0.0
    %253 = vmatpush1.xpose.msra.mxu0 %v211
    %254 = vmatprep.subr.mxu0 0.0
    %255 = vmatpush2.xpose.msra.mxu0 0.0
    %256 = vmatprep.subr.mxu0 0.0
    %257 = vmatpush2.xpose.msra.mxu0 0.0
    %258 = vmatprep.subr.mxu0 0.0
    %259 = vmatpush2.xpose.msra.mxu0 0.0
    %260 = vmatprep.subr.mxu0 0.0
    %261 = vmatpush2.xpose.msra.mxu0 0.0
    %262 = vmatprep.subr.mxu0 0.0
    %263 = vmatpush2.xpose.msra.mxu0 0.0
    %264 = vmatprep.subr.mxu0 0.0
    %265 = vmatpush2.xpose.msra.mxu0 0.0
    %266 = vmatprep.subr.mxu0 0.0
    %267 = vmatpush2.xpose.msra.mxu0 0.0
    %268 = vmatprep.subr.mxu0 0.0
    %269 = vmatpush2.xpose.msra.mxu0 0.0
    %270 = vmatprep.subr.mxu0 0.0
    %271 = vmatpush2.xpose.msra.mxu0 0.0
    %272 = vmatprep.subr.mxu0 0.0
    %273 = vmatpush2.xpose.msra.mxu0 0.0
    %274 = vmatprep.subr.mxu0 0.0
    %275 = vmatpush2.xpose.msra.mxu0 0.0
    %276 = vmatprep.subr.mxu0 0.0
    %277 = vmatpush2.xpose.msra.mxu0 0.0
    %278 = vmatprep.subr.mxu0 0.0
    %279 = vmatpush2.xpose.msra.mxu0 0.0
    %280 = vmatprep.subr.mxu0 0.0
    %281 = vmatpush2.xpose.msra.mxu0 0.0
    %282 = vmatprep.subr.mxu0 0.0
    %283 = vmatpush2.xpose.msra.mxu0 0.0
    %284 = vmatprep.subr.mxu0 0.0
    %285 = vmatpush2.xpose.msra.mxu0 0.0
    %286 = vmatprep.mubr.f32.mxu0 0.0
    %287 = vmatmul.mubr.f32.gmra.mxu0 %v205
    %v288 = vpop.f32.mrf.mxu0
    %v289 = vadd.f32 %v202, %v288
    %v290 = vpop.f32.mrf.mxu0
    %291 = vmatprep.mubr.f32.mxu0 0.0
    %292 = vmatmul.mubr.f32.gmra.mxu0 %v208
    %v293 = vpop.f32.mrf.mxu0
    %v294 = vadd.f32 %v202, %v293
    %v295 = vpop.f32.mrf.mxu0
    %296 = vdwg.mxu0
    %vm297 = vcmask 130048
    %v299 = vsel %vm297, %v289, 0
    %v302 = vsel %vm297, %v183, 0
    %304 = vmatprep.subr.mxu0 0.0
    %305 = vmatpush1.xpose.msra.mxu0 0.0
    %306 = vmatprep.subr.mxu0 0.0
    %307 = vmatpush1.xpose.msra.mxu0 0.0
    %308 = vmatprep.subr.mxu0 0.0
    %309 = vmatpush1.xpose.msra.mxu0 0.0
    %310 = vmatprep.subr.mxu0 0.0
    %311 = vmatpush1.xpose.msra.mxu0 0.0
    %312 = vmatprep.subr.mxu0 0.0
    %313 = vmatpush1.xpose.msra.mxu0 0.0
    %314 = vmatprep.subr.mxu0 0.0
    %315 = vmatpush1.xpose.msra.mxu0 0.0
    %316 = vmatprep.subr.mxu0 0.0
    %317 = vmatpush1.xpose.msra.mxu0 0.0
    %318 = vmatprep.subr.mxu0 0.0
    %319 = vmatpush1.xpose.msra.mxu0 0.0
    %320 = vmatprep.subr.mxu0 0.0
    %321 = vmatpush1.xpose.msra.mxu0 0.0
    %322 = vmatprep.subr.mxu0 0.0
    %323 = vmatpush1.xpose.msra.mxu0 0.0
    %324 = vmatprep.subr.mxu0 0.0
    %325 = vmatpush1.xpose.msra.mxu0 0.0
    %326 = vmatprep.subr.mxu0 0.0
    %327 = vmatpush1.xpose.msra.mxu0 0.0
    %328 = vmatprep.subr.mxu0 0.0
    %329 = vmatpush1.xpose.msra.mxu0 0.0
    %330 = vmatprep.subr.mxu0 0.0
    %331 = vmatpush1.xpose.msra.mxu0 0.0
    %332 = vmatprep.subr.mxu0 0.0
    %333 = vmatpush1.xpose.msra.mxu0 0.0
    %334 = vmatprep.subr.mxu0 0.0
    %335 = vmatpush1.xpose.msra.mxu0 %v302
    %336 = vmatprep.subr.mxu0 0.0
    %337 = vmatpush2.xpose.msra.mxu0 0.0
    %338 = vmatprep.subr.mxu0 0.0
    %339 = vmatpush2.xpose.msra.mxu0 0.0
    %340 = vmatprep.subr.mxu0 0.0
    %341 = vmatpush2.xpose.msra.mxu0 0.0
    %342 = vmatprep.subr.mxu0 0.0
    %343 = vmatpush2.xpose.msra.mxu0 0.0
    %344 = vmatprep.subr.mxu0 0.0
    %345 = vmatpush2.xpose.msra.mxu0 0.0
    %346 = vmatprep.subr.mxu0 0.0
    %347 = vmatpush2.xpose.msra.mxu0 0.0
    %348 = vmatprep.subr.mxu0 0.0
    %349 = vmatpush2.xpose.msra.mxu0 0.0
    %350 = vmatprep.subr.mxu0 0.0
    %351 = vmatpush2.xpose.msra.mxu0 0.0
    %352 = vmatprep.subr.mxu0 0.0
    %353 = vmatpush2.xpose.msra.mxu0 0.0
    %354 = vmatprep.subr.mxu0 0.0
    %355 = vmatpush2.xpose.msra.mxu0 0.0
    %356 = vmatprep.subr.mxu0 0.0
    %357 = vmatpush2.xpose.msra.mxu0 0.0
    %358 = vmatprep.subr.mxu0 0.0
    %359 = vmatpush2.xpose.msra.mxu0 0.0
    %360 = vmatprep.subr.mxu0 0.0
    %361 = vmatpush2.xpose.msra.mxu0 0.0
    %362 = vmatprep.subr.mxu0 0.0
    %363 = vmatpush2.xpose.msra.mxu0 0.0
    %364 = vmatprep.subr.mxu0 0.0
    %365 = vmatpush2.xpose.msra.mxu0 0.0
    %366 = vmatprep.subr.mxu0 0.0
    %367 = vmatpush2.xpose.msra.mxu0 0.0
    %368 = vmatprep.mubr.f32.mxu0 0.0
    %369 = vmatmul.mubr.f32.gmra.mxu0 %v299
    %v370 = vpop.f32.mrf.mxu0
    %v371 = vadd.f32 0.0, %v370
    %v372 = vpop.f32.mrf.mxu0
    %373 = vdwg.mxu0
    %v375 = vsel %vm297, %v294, 0
    %v378 = vsel %vm297, %v188, 0
    %380 = vmatprep.subr.mxu0 0.0
    %381 = vmatpush1.xpose.msra.mxu0 0.0
    %382 = vmatprep.subr.mxu0 0.0
    %383 = vmatpush1.xpose.msra.mxu0 0.0
    %384 = vmatprep.subr.mxu0 0.0
    %385 = vmatpush1.xpose.msra.mxu0 0.0
    %386 = vmatprep.subr.mxu0 0.0
    %387 = vmatpush1.xpose.msra.mxu0 0.0
    %388 = vmatprep.subr.mxu0 0.0
    %389 = vmatpush1.xpose.msra.mxu0 0.0
    %390 = vmatprep.subr.mxu0 0.0
    %391 = vmatpush1.xpose.msra.mxu0 0.0
    %392 = vmatprep.subr.mxu0 0.0
    %393 = vmatpush1.xpose.msra.mxu0 0.0
    %394 = vmatprep.subr.mxu0 0.0
    %395 = vmatpush1.xpose.msra.mxu0 0.0
    %396 = vmatprep.subr.mxu0 0.0
    %397 = vmatpush1.xpose.msra.mxu0 0.0
    %398 = vmatprep.subr.mxu0 0.0
    %399 = vmatpush1.xpose.msra.mxu0 0.0
    %400 = vmatprep.subr.mxu0 0.0
    %401 = vmatpush1.xpose.msra.mxu0 0.0
    %402 = vmatprep.subr.mxu0 0.0
    %403 = vmatpush1.xpose.msra.mxu0 0.0
    %404 = vmatprep.subr.mxu0 0.0
    %405 = vmatpush1.xpose.msra.mxu0 0.0
    %406 = vmatprep.subr.mxu0 0.0
    %407 = vmatpush1.xpose.msra.mxu0 0.0
    %408 = vmatprep.subr.mxu0 0.0
    %409 = vmatpush1.xpose.msra.mxu0 0.0
    %410 = vmatprep.subr.mxu0 0.0
    %411 = vmatpush1.xpose.msra.mxu0 %v378
    %412 = vmatprep.subr.mxu0 0.0
    %413 = vmatpush2.xpose.msra.mxu0 0.0
    %414 = vmatprep.subr.mxu0 0.0
    %415 = vmatpush2.xpose.msra.mxu0 0.0
    %416 = vmatprep.subr.mxu0 0.0
    %417 = vmatpush2.xpose.msra.mxu0 0.0
    %418 = vmatprep.subr.mxu0 0.0
    %419 = vmatpush2.xpose.msra.mxu0 0.0
    %420 = vmatprep.subr.mxu0 0.0
    %421 = vmatpush2.xpose.msra.mxu0 0.0
    %422 = vmatprep.subr.mxu0 0.0
    %423 = vmatpush2.xpose.msra.mxu0 0.0
    %424 = vmatprep.subr.mxu0 0.0
    %425 = vmatpush2.xpose.msra.mxu0 0.0
    %426 = vmatprep.subr.mxu0 0.0
    %427 = vmatpush2.xpose.msra.mxu0 0.0
    %428 = vmatprep.subr.mxu0 0.0
    %429 = vmatpush2.xpose.msra.mxu0 0.0
    %430 = vmatprep.subr.mxu0 0.0
    %431 = vmatpush2.xpose.msra.mxu0 0.0
    %432 = vmatprep.subr.mxu0 0.0
    %433 = vmatpush2.xpose.msra.mxu0 0.0
    %434 = vmatprep.subr.mxu0 0.0
    %435 = vmatpush2.xpose.msra.mxu0 0.0
    %436 = vmatprep.subr.mxu0 0.0
    %437 = vmatpush2.xpose.msra.mxu0 0.0
    %438 = vmatprep.subr.mxu0 0.0
    %439 = vmatpush2.xpose.msra.mxu0 0.0
    %440 = vmatprep.subr.mxu0 0.0
    %441 = vmatpush2.xpose.msra.mxu0 0.0
    %442 = vmatprep.subr.mxu0 0.0
    %443 = vmatpush2.xpose.msra.mxu0 0.0
    %444 = vmatprep.mubr.f32.mxu0 0.0
    %445 = vmatmul.mubr.f32.gmra.mxu0 %v375
    %v446 = vpop.f32.mrf.mxu0
    %v447 = vadd.f32 0.0, %v446
    %v448 = vpop.f32.mrf.mxu0
    %449 = vdwg.mxu0
    %vm450 = vcmask 64512
    %451 = vst.msk [vmem:[#allocation11] sm:$0xff] %vm450, %v371
    %452 = vst.msk [vmem:[#allocation11 + $0x8] sm:$0xff] %vm450, %v447
    %v453 = vld [vmem:[#allocation8] sm:$0xff]
    %v454 = vld [vmem:[#allocation8 + $0x8] sm:$0xff]
    %455 = vmatprep.subr.mxu0 0.0
    %456 = vmatpush1.msra.mxu0 0.0
    %457 = vmatprep.subr.mxu0 0.0
    %458 = vmatpush1.msra.mxu0 0.0
    %459 = vmatprep.subr.mxu0 0.0
    %460 = vmatpush1.msra.mxu0 0.0
    %461 = vmatprep.subr.mxu0 0.0
    %462 = vmatpush1.msra.mxu0 0.0
    %463 = vmatprep.subr.mxu0 0.0
    %464 = vmatpush1.msra.mxu0 0.0
    %465 = vmatprep.subr.mxu0 0.0
    %466 = vmatpush1.msra.mxu0 0.0
    %467 = vmatprep.subr.mxu0 0.0
    %468 = vmatpush1.msra.mxu0 0.0
    %469 = vmatprep.subr.mxu0 0.0
    %470 = vmatpush1.msra.mxu0 0.0
    %471 = vmatprep.subr.mxu0 0.0
    %472 = vmatpush1.msra.mxu0 0.0
    %473 = vmatprep.subr.mxu0 0.0
    %474 = vmatpush1.msra.mxu0 0.0
    %475 = vmatprep.subr.mxu0 0.0
    %476 = vmatpush1.msra.mxu0 0.0
    %477 = vmatprep.subr.mxu0 0.0
    %478 = vmatpush1.msra.mxu0 0.0
    %479 = vmatprep.subr.mxu0 0.0
    %480 = vmatpush1.msra.mxu0 0.0
    %481 = vmatprep.subr.mxu0 0.0
    %482 = vmatpush1.msra.mxu0 0.0
    %483 = vmatprep.subr.mxu0 0.0
    %484 = vmatpush1.msra.mxu0 %v454
    %485 = vmatprep.subr.mxu0 0.0
    %486 = vmatpush1.msra.mxu0 %v453
    %487 = vmatprep.subr.mxu0 0.0
    %488 = vmatpush2.msra.mxu0 0.0
    %489 = vmatprep.subr.mxu0 0.0
    %490 = vmatpush2.msra.mxu0 0.0
    %491 = vmatprep.subr.mxu0 0.0
    %492 = vmatpush2.msra.mxu0 0.0
    %493 = vmatprep.subr.mxu0 0.0
    %494 = vmatpush2.msra.mxu0 0.0
    %495 = vmatprep.subr.mxu0 0.0
    %496 = vmatpush2.msra.mxu0 0.0
    %497 = vmatprep.subr.mxu0 0.0
    %498 = vmatpush2.msra.mxu0 0.0
    %499 = vmatprep.subr.mxu0 0.0
    %500 = vmatpush2.msra.mxu0 0.0
    %501 = vmatprep.subr.mxu0 0.0
    %502 = vmatpush2.msra.mxu0 0.0
    %503 = vmatprep.subr.mxu0 0.0
    %504 = vmatpush2.msra.mxu0 0.0
    %505 = vmatprep.subr.mxu0 0.0
    %506 = vmatpush2.msra.mxu0 0.0
    %507 = vmatprep.subr.mxu0 0.0
    %508 = vmatpush2.msra.mxu0 0.0
    %509 = vmatprep.subr.mxu0 0.0
    %510 = vmatpush2.msra.mxu0 0.0
    %511 = vmatprep.subr.mxu0 0.0
    %512 = vmatpush2.msra.mxu0 0.0
    %513 = vmatprep.subr.mxu0 0.0
    %514 = vmatpush2.msra.mxu0 0.0
    %515 = vmatprep.subr.mxu0 0.0
    %516 = vmatpush2.msra.mxu0 0.0
    %517 = vmatprep.subr.mxu0 0.0
    %518 = vmatpush2.msra.mxu0 0.0
    %519 = vmatprep.mubr.f32.mxu0 0.0
    %520 = vmatmul.mubr.f32.gmra.mxu0 %v302
    %v521 = vpop.f32.mrf.mxu0
    %v522 = vadd.f32 0.0, %v521
    %v523 = vpop.f32.mrf.mxu0
    %524 = vmatprep.mubr.f32.mxu0 0.0
    %525 = vmatmul.mubr.f32.gmra.mxu0 %v378
    %v526 = vpop.f32.mrf.mxu0
    %v527 = vadd.f32 0.0, %v526
    %v528 = vpop.f32.mrf.mxu0
    %529 = vdwg.mxu0
    %530 = vrot.lane.b32.xlu0 %v289, 112
    %v531 = vpop.permute.xlu0 %530
    %532 = vrot.lane.b32.xlu0 %v183, 112
    %v533 = vpop.permute.xlu0 %532
    %v534 = vsel %vm297, %v531, 0
    %v536 = vsel %vm297, %v533, 0
    %538 = vmatprep.subr.mxu0 0.0
    %539 = vmatpush1.xpose.msra.mxu0 0.0
    %540 = vmatprep.subr.mxu0 0.0
    %541 = vmatpush1.xpose.msra.mxu0 0.0
    %542 = vmatprep.subr.mxu0 0.0
    %543 = vmatpush1.xpose.msra.mxu0 0.0
    %544 = vmatprep.subr.mxu0 0.0
    %545 = vmatpush1.xpose.msra.mxu0 0.0
    %546 = vmatprep.subr.mxu0 0.0
    %547 = vmatpush1.xpose.msra.mxu0 0.0
    %548 = vmatprep.subr.mxu0 0.0
    %549 = vmatpush1.xpose.msra.mxu0 0.0
    %550 = vmatprep.subr.mxu0 0.0
    %551 = vmatpush1.xpose.msra.mxu0 0.0
    %552 = vmatprep.subr.mxu0 0.0
    %553 = vmatpush1.xpose.msra.mxu0 0.0
    %554 = vmatprep.subr.mxu0 0.0
    %555 = vmatpush1.xpose.msra.mxu0 0.0
    %556 = vmatprep.subr.mxu0 0.0
    %557 = vmatpush1.xpose.msra.mxu0 0.0
    %558 = vmatprep.subr.mxu0 0.0
    %559 = vmatpush1.xpose.msra.mxu0 0.0
    %560 = vmatprep.subr.mxu0 0.0
    %561 = vmatpush1.xpose.msra.mxu0 0.0
    %562 = vmatprep.subr.mxu0 0.0
    %563 = vmatpush1.xpose.msra.mxu0 0.0
    %564 = vmatprep.subr.mxu0 0.0
    %565 = vmatpush1.xpose.msra.mxu0 0.0
    %566 = vmatprep.subr.mxu0 0.0
    %567 = vmatpush1.xpose.msra.mxu0 0.0
    %568 = vmatprep.subr.mxu0 0.0
    %569 = vmatpush1.xpose.msra.mxu0 %v536
    %570 = vmatprep.subr.mxu0 0.0
    %571 = vmatpush2.xpose.msra.mxu0 0.0
    %572 = vmatprep.subr.mxu0 0.0
    %573 = vmatpush2.xpose.msra.mxu0 0.0
    %574 = vmatprep.subr.mxu0 0.0
    %575 = vmatpush2.xpose.msra.mxu0 0.0
    %576 = vmatprep.subr.mxu0 0.0
    %577 = vmatpush2.xpose.msra.mxu0 0.0
    %578 = vmatprep.subr.mxu0 0.0
    %579 = vmatpush2.xpose.msra.mxu0 0.0
    %580 = vmatprep.subr.mxu0 0.0
    %581 = vmatpush2.xpose.msra.mxu0 0.0
    %582 = vmatprep.subr.mxu0 0.0
    %583 = vmatpush2.xpose.msra.mxu0 0.0
    %584 = vmatprep.subr.mxu0 0.0
    %585 = vmatpush2.xpose.msra.mxu0 0.0
    %586 = vmatprep.subr.mxu0 0.0
    %587 = vmatpush2.xpose.msra.mxu0 0.0
    %588 = vmatprep.subr.mxu0 0.0
    %589 = vmatpush2.xpose.msra.mxu0 0.0
    %590 = vmatprep.subr.mxu0 0.0
    %591 = vmatpush2.xpose.msra.mxu0 0.0
    %592 = vmatprep.subr.mxu0 0.0
    %593 = vmatpush2.xpose.msra.mxu0 0.0
    %594 = vmatprep.subr.mxu0 0.0
    %595 = vmatpush2.xpose.msra.mxu0 0.0
    %596 = vmatprep.subr.mxu0 0.0
    %597 = vmatpush2.xpose.msra.mxu0 0.0
    %598 = vmatprep.subr.mxu0 0.0
    %599 = vmatpush2.xpose.msra.mxu0 0.0
    %600 = vmatprep.subr.mxu0 0.0
    %601 = vmatpush2.xpose.msra.mxu0 0.0
    %602 = vmatprep.mubr.f32.mxu0 0.0
    %603 = vmatmul.mubr.f32.gmra.mxu0 %v534
    %v604 = vpop.f32.mrf.mxu0
    %v605 = vadd.f32 0.0, %v604
    %v606 = vpop.f32.mrf.mxu0
    %607 = vdwg.mxu0
    %608 = vrot.lane.b32.xlu0 %v294, 112
    %v609 = vpop.permute.xlu0 %608
    %610 = vrot.lane.b32.xlu0 %v188, 112
    %v611 = vpop.permute.xlu0 %610
    %v612 = vsel %vm297, %v609, 0
    %v614 = vsel %vm297, %v611, 0
    %616 = vmatprep.subr.mxu0 0.0
    %617 = vmatpush1.xpose.msra.mxu0 0.0
    %618 = vmatprep.subr.mxu0 0.0
    %619 = vmatpush1.xpose.msra.mxu0 0.0
    %620 = vmatprep.subr.mxu0 0.0
    %621 = vmatpush1.xpose.msra.mxu0 0.0
    %622 = vmatprep.subr.mxu0 0.0
    %623 = vmatpush1.xpose.msra.mxu0 0.0
    %624 = vmatprep.subr.mxu0 0.0
    %625 = vmatpush1.xpose.msra.mxu0 0.0
    %626 = vmatprep.subr.mxu0 0.0
    %627 = vmatpush1.xpose.msra.mxu0 0.0
    %628 = vmatprep.subr.mxu0 0.0
    %629 = vmatpush1.xpose.msra.mxu0 0.0
    %630 = vmatprep.subr.mxu0 0.0
    %631 = vmatpush1.xpose.msra.mxu0 0.0
    %632 = vmatprep.subr.mxu0 0.0
    %633 = vmatpush1.xpose.msra.mxu0 0.0
    %634 = vmatprep.subr.mxu0 0.0
    %635 = vmatpush1.xpose.msra.mxu0 0.0
    %636 = vmatprep.subr.mxu0 0.0
    %637 = vmatpush1.xpose.msra.mxu0 0.0
    %638 = vmatprep.subr.mxu0 0.0
    %639 = vmatpush1.xpose.msra.mxu0 0.0
    %640 = vmatprep.subr.mxu0 0.0
    %641 = vmatpush1.xpose.msra.mxu0 0.0
    %642 = vmatprep.subr.mxu0 0.0
    %643 = vmatpush1.xpose.msra.mxu0 0.0
    %644 = vmatprep.subr.mxu0 0.0
    %645 = vmatpush1.xpose.msra.mxu0 0.0
    %646 = vmatprep.subr.mxu0 0.0
    %647 = vmatpush1.xpose.msra.mxu0 %v614
    %648 = vmatprep.subr.mxu0 0.0
    %649 = vmatpush2.xpose.msra.mxu0 0.0
    %650 = vmatprep.subr.mxu0 0.0
    %651 = vmatpush2.xpose.msra.mxu0 0.0
    %652 = vmatprep.subr.mxu0 0.0
    %653 = vmatpush2.xpose.msra.mxu0 0.0
    %654 = vmatprep.subr.mxu0 0.0
    %655 = vmatpush2.xpose.msra.mxu0 0.0
    %656 = vmatprep.subr.mxu0 0.0
    %657 = vmatpush2.xpose.msra.mxu0 0.0
    %658 = vmatprep.subr.mxu0 0.0
    %659 = vmatpush2.xpose.msra.mxu0 0.0
    %660 = vmatprep.subr.mxu0 0.0
    %661 = vmatpush2.xpose.msra.mxu0 0.0
    %662 = vmatprep.subr.mxu0 0.0
    %663 = vmatpush2.xpose.msra.mxu0 0.0
    %664 = vmatprep.subr.mxu0 0.0
    %665 = vmatpush2.xpose.msra.mxu0 0.0
    %666 = vmatprep.subr.mxu0 0.0
    %667 = vmatpush2.xpose.msra.mxu0 0.0
    %668 = vmatprep.subr.mxu0 0.0
    %669 = vmatpush2.xpose.msra.mxu0 0.0
    %670 = vmatprep.subr.mxu0 0.0
    %671 = vmatpush2.xpose.msra.mxu0 0.0
    %672 = vmatprep.subr.mxu0 0.0
    %673 = vmatpush2.xpose.msra.mxu0 0.0
    %674 = vmatprep.subr.mxu0 0.0
    %675 = vmatpush2.xpose.msra.mxu0 0.0
    %676 = vmatprep.subr.mxu0 0.0
    %677 = vmatpush2.xpose.msra.mxu0 0.0
    %678 = vmatprep.subr.mxu0 0.0
    %679 = vmatpush2.xpose.msra.mxu0 0.0
    %680 = vmatprep.mubr.f32.mxu0 0.0
    %681 = vmatmul.mubr.f32.gmra.mxu0 %v612
    %v682 = vpop.f32.mrf.mxu0
    %v683 = vadd.f32 0.0, %v682
    %v684 = vpop.f32.mrf.mxu0
    %685 = vdwg.mxu0
    %s686 = scalar_lea.vmem [#allocation11], 16
    %687 = vst.msk [vmem:[%s686] sm:$0xff] %vm450, %v605
    %688 = vst.msk [vmem:[%s686 + $0x8] sm:$0xff] %vm450, %v683
    %s689 = scalar_lea.vmem [#allocation8], 16
    %v690 = vld [vmem:[%s689] sm:$0xff]
    %v691 = vld [vmem:[%s689 + $0x8] sm:$0xff]
    %692 = vmatprep.subr.mxu0 0.0
    %693 = vmatpush1.msra.mxu0 0.0
    %694 = vmatprep.subr.mxu0 0.0
    %695 = vmatpush1.msra.mxu0 0.0
    %696 = vmatprep.subr.mxu0 0.0
    %697 = vmatpush1.msra.mxu0 0.0
    %698 = vmatprep.subr.mxu0 0.0
    %699 = vmatpush1.msra.mxu0 0.0
    %700 = vmatprep.subr.mxu0 0.0
    %701 = vmatpush1.msra.mxu0 0.0
    %702 = vmatprep.subr.mxu0 0.0
    %703 = vmatpush1.msra.mxu0 0.0
    %704 = vmatprep.subr.mxu0 0.0
    %705 = vmatpush1.msra.mxu0 0.0
    %706 = vmatprep.subr.mxu0 0.0
    %707 = vmatpush1.msra.mxu0 0.0
    %708 = vmatprep.subr.mxu0 0.0
    %709 = vmatpush1.msra.mxu0 0.0
    %710 = vmatprep.subr.mxu0 0.0
    %711 = vmatpush1.msra.mxu0 0.0
    %712 = vmatprep.subr.mxu0 0.0
    %713 = vmatpush1.msra.mxu0 0.0
    %714 = vmatprep.subr.mxu0 0.0
    %715 = vmatpush1.msra.mxu0 0.0
    %716 = vmatprep.subr.mxu0 0.0
    %717 = vmatpush1.msra.mxu0 0.0
    %718 = vmatprep.subr.mxu0 0.0
    %719 = vmatpush1.msra.mxu0 0.0
    %720 = vmatprep.subr.mxu0 0.0
    %721 = vmatpush1.msra.mxu0 %v691
    %722 = vmatprep.subr.mxu0 0.0
    %723 = vmatpush1.msra.mxu0 %v690
    %724 = vmatprep.subr.mxu0 0.0
    %725 = vmatpush2.msra.mxu0 0.0
    %726 = vmatprep.subr.mxu0 0.0
    %727 = vmatpush2.msra.mxu0 0.0
    %728 = vmatprep.subr.mxu0 0.0
    %729 = vmatpush2.msra.mxu0 0.0
    %730 = vmatprep.subr.mxu0 0.0
    %731 = vmatpush2.msra.mxu0 0.0
    %732 = vmatprep.subr.mxu0 0.0
    %733 = vmatpush2.msra.mxu0 0.0
    %734 = vmatprep.subr.mxu0 0.0
    %735 = vmatpush2.msra.mxu0 0.0
    %736 = vmatprep.subr.mxu0 0.0
    %737 = vmatpush2.msra.mxu0 0.0
    %738 = vmatprep.subr.mxu0 0.0
    %739 = vmatpush2.msra.mxu0 0.0
    %740 = vmatprep.subr.mxu0 0.0
    %741 = vmatpush2.msra.mxu0 0.0
    %742 = vmatprep.subr.mxu0 0.0
    %743 = vmatpush2.msra.mxu0 0.0
    %744 = vmatprep.subr.mxu0 0.0
    %745 = vmatpush2.msra.mxu0 0.0
    %746 = vmatprep.subr.mxu0 0.0
    %747 = vmatpush2.msra.mxu0 0.0
    %748 = vmatprep.subr.mxu0 0.0
    %749 = vmatpush2.msra.mxu0 0.0
    %750 = vmatprep.subr.mxu0 0.0
    %751 = vmatpush2.msra.mxu0 0.0
    %752 = vmatprep.subr.mxu0 0.0
    %753 = vmatpush2.msra.mxu0 0.0
    %754 = vmatprep.subr.mxu0 0.0
    %755 = vmatpush2.msra.mxu0 0.0
    %756 = vmatprep.mubr.f32.mxu0 0.0
    %757 = vmatmul.mubr.f32.gmra.mxu0 %v536
    %v758 = vpop.f32.mrf.mxu0
    %v759 = vadd.f32 0.0, %v758
    %v760 = vpop.f32.mrf.mxu0
    %761 = vmatprep.mubr.f32.mxu0 0.0
    %762 = vmatmul.mubr.f32.gmra.mxu0 %v614
    %v763 = vpop.f32.mrf.mxu0
    %v764 = vadd.f32 0.0, %v763
    %v765 = vpop.f32.mrf.mxu0
    %766 = vdwg.mxu0
    %v767 = vld [vmem:[#allocation11] sm:$0xff]
    %v768 = vld [vmem:[#allocation11 + $0x8] sm:$0xff]
    %v769 = vld [vmem:[#allocation11 + $0x10] sm:$0xff]
    %v770 = vld [vmem:[#allocation11 + $0x18] sm:$0xff]
    %v771 = vsel %vm450, %v767, -inf
    %v772 = vsel %vm450, %v768, -inf
    %v773 = vsel %vm450, %v769, -inf
    %v774 = vsel %vm450, %v770, -inf
    %v775 = vmax.f32 %v771, %v772
    %v776 = vmax.f32 %v773, %v774
    %v777 = vmax.f32 %v775, %v776
    %v778 = vsub.f32 %v767, %v777
    %v779 = vsub.f32 %v768, %v777
    %v780 = vsub.f32 %v769, %v777
    %v781 = vsub.f32 %v770, %v777
    %v782 = vmul.f32 %v778, 1.442695
    %v783 = vpow.pop %v782
    %v784 = vmul.f32 %v779, 1.442695
    %v785 = vpow.pop %v784
    %v786 = vmul.f32 %v780, 1.442695
    %v787 = vpow.pop %v786
    %v788 = vmul.f32 %v781, 1.442695
    %v789 = vpow.pop %v788
    %v790 = vsel %vm450, %v783, 0.0
    %v791 = vsel %vm450, %v785, 0.0
    %v792 = vadd.f32 %v790, %v791
    %v793 = vsel %vm450, %v787, 0.0
    %v794 = vadd.f32 %v792, %v793
    %v795 = vsel %vm450, %v789, 0.0
    %v796 = vadd.f32 %v794, %v795
    %v797 = vrcp.pop %v796
    %v798 = vmul.f32 %v783, %v797
    %v799 = vmul.f32 %v785, %v797
    %v800 = vmul.f32 %v787, %v797
    %v801 = vmul.f32 %v789, %v797
    %802 = vst.msk [vmem:[#allocation11] sm:$0xff] %vm450, %v798
    %803 = vst.msk [vmem:[#allocation11 + $0x8] sm:$0xff] %vm450, %v799
    %804 = vst.msk [vmem:[#allocation11 + $0x10] sm:$0xff] %vm450, %v800
    %805 = vst.msk [vmem:[#allocation11 + $0x18] sm:$0xff] %vm450, %v801
    %v807 = vsel %vm450, %v800, 0
    %809 = vmatprep.subr.mxu0 0.0
    %810 = vmatpush1.msra.mxu0 0.0
    %811 = vmatprep.subr.mxu0 0.0
    %812 = vmatpush1.msra.mxu0 0.0
    %813 = vmatprep.subr.mxu0 0.0
    %814 = vmatpush1.msra.mxu0 0.0
    %815 = vmatprep.subr.mxu0 0.0
    %816 = vmatpush1.msra.mxu0 0.0
    %817 = vmatprep.subr.mxu0 0.0
    %818 = vmatpush1.msra.mxu0 0.0
    %819 = vmatprep.subr.mxu0 0.0
    %820 = vmatpush1.msra.mxu0 0.0
    %821 = vmatprep.subr.mxu0 0.0
    %822 = vmatpush1.msra.mxu0 0.0
    %823 = vmatprep.subr.mxu0 0.0
    %824 = vmatpush1.msra.mxu0 0.0
    %825 = vmatprep.subr.mxu0 0.0
    %826 = vmatpush1.msra.mxu0 0.0
    %827 = vmatprep.subr.mxu0 0.0
    %828 = vmatpush1.msra.mxu0 0.0
    %829 = vmatprep.subr.mxu0 0.0
    %830 = vmatpush1.msra.mxu0 0.0
    %831 = vmatprep.subr.mxu0 0.0
    %832 = vmatpush1.msra.mxu0 0.0
    %833 = vmatprep.subr.mxu0 0.0
    %834 = vmatpush1.msra.mxu0 0.0
    %835 = vmatprep.subr.mxu0 0.0
    %836 = vmatpush1.msra.mxu0 0.0
    %837 = vmatprep.subr.mxu0 0.0
    %838 = vmatpush1.msra.mxu0 0.0
    %839 = vmatprep.subr.mxu0 0.0
    %840 = vmatpush1.msra.mxu0 %v759
    %841 = vmatprep.subr.mxu0 0.0
    %842 = vmatpush2.msra.mxu0 0.0
    %843 = vmatprep.subr.mxu0 0.0
    %844 = vmatpush2.msra.mxu0 0.0
    %845 = vmatprep.subr.mxu0 0.0
    %846 = vmatpush2.msra.mxu0 0.0
    %847 = vmatprep.subr.mxu0 0.0
    %848 = vmatpush2.msra.mxu0 0.0
    %849 = vmatprep.subr.mxu0 0.0
    %850 = vmatpush2.msra.mxu0 0.0
    %851 = vmatprep.subr.mxu0 0.0
    %852 = vmatpush2.msra.mxu0 0.0
    %853 = vmatprep.subr.mxu0 0.0
    %854 = vmatpush2.msra.mxu0 0.0
    %855 = vmatprep.subr.mxu0 0.0
    %856 = vmatpush2.msra.mxu0 0.0
    %857 = vmatprep.subr.mxu0 0.0
    %858 = vmatpush2.msra.mxu0 0.0
    %859 = vmatprep.subr.mxu0 0.0
    %860 = vmatpush2.msra.mxu0 0.0
    %861 = vmatprep.subr.mxu0 0.0
    %862 = vmatpush2.msra.mxu0 0.0
    %863 = vmatprep.subr.mxu0 0.0
    %864 = vmatpush2.msra.mxu0 0.0
    %865 = vmatprep.subr.mxu0 0.0
    %866 = vmatpush2.msra.mxu0 0.0
    %867 = vmatprep.subr.mxu0 0.0
    %868 = vmatpush2.msra.mxu0 0.0
    %869 = vmatprep.subr.mxu0 0.0
    %870 = vmatpush2.msra.mxu0 0.0
    %871 = vmatprep.subr.mxu0 0.0
    %872 = vmatpush2.msra.mxu0 0.0
    %873 = vmatprep.mubr.f32.mxu0 0.0
    %874 = vmatmul.mubr.f32.gmra.mxu0 %v807
    %v875 = vpop.f32.mrf.mxu0
    %v876 = vadd.f32 0.0, %v875
    %v877 = vpop.f32.mrf.mxu0
    %878 = vdwg.mxu0
    %v880 = vsel %vm450, %v801, 0
    %882 = vmatprep.subr.mxu0 0.0
    %883 = vmatpush1.msra.mxu0 0.0
    %884 = vmatprep.subr.mxu0 0.0
    %885 = vmatpush1.msra.mxu0 0.0
    %886 = vmatprep.subr.mxu0 0.0
    %887 = vmatpush1.msra.mxu0 0.0
    %888 = vmatprep.subr.mxu0 0.0
    %889 = vmatpush1.msra.mxu0 0.0
    %890 = vmatprep.subr.mxu0 0.0
    %891 = vmatpush1.msra.mxu0 0.0
    %892 = vmatprep.subr.mxu0 0.0
    %893 = vmatpush1.msra.mxu0 0.0
    %894 = vmatprep.subr.mxu0 0.0
    %895 = vmatpush1.msra.mxu0 0.0
    %896 = vmatprep.subr.mxu0 0.0
    %897 = vmatpush1.msra.mxu0 0.0
    %898 = vmatprep.subr.mxu0 0.0
    %899 = vmatpush1.msra.mxu0 0.0
    %900 = vmatprep.subr.mxu0 0.0
    %901 = vmatpush1.msra.mxu0 0.0
    %902 = vmatprep.subr.mxu0 0.0
    %903 = vmatpush1.msra.mxu0 0.0
    %904 = vmatprep.subr.mxu0 0.0
    %905 = vmatpush1.msra.mxu0 0.0
    %906 = vmatprep.subr.mxu0 0.0
    %907 = vmatpush1.msra.mxu0 0.0
    %908 = vmatprep.subr.mxu0 0.0
    %909 = vmatpush1.msra.mxu0 0.0
    %910 = vmatprep.subr.mxu0 0.0
    %911 = vmatpush1.msra.mxu0 0.0
    %912 = vmatprep.subr.mxu0 0.0
    %913 = vmatpush1.msra.mxu0 %v764
    %914 = vmatprep.subr.mxu0 0.0
    %915 = vmatpush2.msra.mxu0 0.0
    %916 = vmatprep.subr.mxu0 0.0
    %917 = vmatpush2.msra.mxu0 0.0
    %918 = vmatprep.subr.mxu0 0.0
    %919 = vmatpush2.msra.mxu0 0.0
    %920 = vmatprep.subr.mxu0 0.0
    %921 = vmatpush2.msra.mxu0 0.0
    %922 = vmatprep.subr.mxu0 0.0
    %923 = vmatpush2.msra.mxu0 0.0
    %924 = vmatprep.subr.mxu0 0.0
    %925 = vmatpush2.msra.mxu0 0.0
    %926 = vmatprep.subr.mxu0 0.0
    %927 = vmatpush2.msra.mxu0 0.0
    %928 = vmatprep.subr.mxu0 0.0
    %929 = vmatpush2.msra.mxu0 0.0
    %930 = vmatprep.subr.mxu0 0.0
    %931 = vmatpush2.msra.mxu0 0.0
    %932 = vmatprep.subr.mxu0 0.0
    %933 = vmatpush2.msra.mxu0 0.0
    %934 = vmatprep.subr.mxu0 0.0
    %935 = vmatpush2.msra.mxu0 0.0
    %936 = vmatprep.subr.mxu0 0.0
    %937 = vmatpush2.msra.mxu0 0.0
    %938 = vmatprep.subr.mxu0 0.0
    %939 = vmatpush2.msra.mxu0 0.0
    %940 = vmatprep.subr.mxu0 0.0
    %941 = vmatpush2.msra.mxu0 0.0
    %942 = vmatprep.subr.mxu0 0.0
    %943 = vmatpush2.msra.mxu0 0.0
    %944 = vmatprep.subr.mxu0 0.0
    %945 = vmatpush2.msra.mxu0 0.0
    %946 = vmatprep.mubr.f32.mxu0 0.0
    %947 = vmatmul.mubr.f32.gmra.mxu0 %v880
    %v948 = vpop.f32.mrf.mxu0
    %v949 = vadd.f32 0.0, %v948
    %v950 = vpop.f32.mrf.mxu0
    %951 = vdwg.mxu0
    %v953 = vsel %vm450, %v798, 0
    %955 = vmatprep.subr.mxu0 0.0
    %956 = vmatpush1.msra.mxu0 0.0
    %957 = vmatprep.subr.mxu0 0.0
    %958 = vmatpush1.msra.mxu0 0.0
    %959 = vmatprep.subr.mxu0 0.0
    %960 = vmatpush1.msra.mxu0 0.0
    %961 = vmatprep.subr.mxu0 0.0
    %962 = vmatpush1.msra.mxu0 0.0
    %963 = vmatprep.subr.mxu0 0.0
    %964 = vmatpush1.msra.mxu0 0.0
    %965 = vmatprep.subr.mxu0 0.0
    %966 = vmatpush1.msra.mxu0 0.0
    %967 = vmatprep.subr.mxu0 0.0
    %968 = vmatpush1.msra.mxu0 0.0
    %969 = vmatprep.subr.mxu0 0.0
    %970 = vmatpush1.msra.mxu0 0.0
    %971 = vmatprep.subr.mxu0 0.0
    %972 = vmatpush1.msra.mxu0 0.0
    %973 = vmatprep.subr.mxu0 0.0
    %974 = vmatpush1.msra.mxu0 0.0
    %975 = vmatprep.subr.mxu0 0.0
    %976 = vmatpush1.msra.mxu0 0.0
    %977 = vmatprep.subr.mxu0 0.0
    %978 = vmatpush1.msra.mxu0 0.0
    %979 = vmatprep.subr.mxu0 0.0
    %980 = vmatpush1.msra.mxu0 0.0
    %981 = vmatprep.subr.mxu0 0.0
    %982 = vmatpush1.msra.mxu0 0.0
    %983 = vmatprep.subr.mxu0 0.0
    %984 = vmatpush1.msra.mxu0 0.0
    %985 = vmatprep.subr.mxu0 0.0
    %986 = vmatpush1.msra.mxu0 %v522
    %987 = vmatprep.subr.mxu0 0.0
    %988 = vmatpush2.msra.mxu0 0.0
    %989 = vmatprep.subr.mxu0 0.0
    %990 = vmatpush2.msra.mxu0 0.0
    %991 = vmatprep.subr.mxu0 0.0
    %992 = vmatpush2.msra.mxu0 0.0
    %993 = vmatprep.subr.mxu0 0.0
    %994 = vmatpush2.msra.mxu0 0.0
    %995 = vmatprep.subr.mxu0 0.0
    %996 = vmatpush2.msra.mxu0 0.0
    %997 = vmatprep.subr.mxu0 0.0
    %998 = vmatpush2.msra.mxu0 0.0
    %999 = vmatprep.subr.mxu0 0.0
    %1000 = vmatpush2.msra.mxu0 0.0
    %1001 = vmatprep.subr.mxu0 0.0
    %1002 = vmatpush2.msra.mxu0 0.0
    %1003 = vmatprep.subr.mxu0 0.0
    %1004 = vmatpush2.msra.mxu0 0.0
    %1005 = vmatprep.subr.mxu0 0.0
    %1006 = vmatpush2.msra.mxu0 0.0
    %1007 = vmatprep.subr.mxu0 0.0
    %1008 = vmatpush2.msra.mxu0 0.0
    %1009 = vmatprep.subr.mxu0 0.0
    %1010 = vmatpush2.msra.mxu0 0.0
    %1011 = vmatprep.subr.mxu0 0.0
    %1012 = vmatpush2.msra.mxu0 0.0
    %1013 = vmatprep.subr.mxu0 0.0
    %1014 = vmatpush2.msra.mxu0 0.0
    %1015 = vmatprep.subr.mxu0 0.0
    %1016 = vmatpush2.msra.mxu0 0.0
    %1017 = vmatprep.subr.mxu0 0.0
    %1018 = vmatpush2.msra.mxu0 0.0
    %1019 = vmatprep.mubr.f32.mxu0 0.0
    %1020 = vmatmul.mubr.f32.gmra.mxu0 %v953
    %v1021 = vpop.f32.mrf.mxu0
    %v1022 = vadd.f32 %v876, %v1021
    %v1023 = vpop.f32.mrf.mxu0
    %1024 = vdwg.mxu0
    %v1026 = vsel %vm450, %v799, 0
    %1028 = vmatprep.subr.mxu0 0.0
    %1029 = vmatpush1.msra.mxu0 0.0
    %1030 = vmatprep.subr.mxu0 0.0
    %1031 = vmatpush1.msra.mxu0 0.0
    %1032 = vmatprep.subr.mxu0 0.0
    %1033 = vmatpush1.msra.mxu0 0.0
    %1034 = vmatprep.subr.mxu0 0.0
    %1035 = vmatpush1.msra.mxu0 0.0
    %1036 = vmatprep.subr.mxu0 0.0
    %1037 = vmatpush1.msra.mxu0 0.0
    %1038 = vmatprep.subr.mxu0 0.0
    %1039 = vmatpush1.msra.mxu0 0.0
    %1040 = vmatprep.subr.mxu0 0.0
    %1041 = vmatpush1.msra.mxu0 0.0
    %1042 = vmatprep.subr.mxu0 0.0
    %1043 = vmatpush1.msra.mxu0 0.0
    %1044 = vmatprep.subr.mxu0 0.0
    %1045 = vmatpush1.msra.mxu0 0.0
    %1046 = vmatprep.subr.mxu0 0.0
    %1047 = vmatpush1.msra.mxu0 0.0
    %1048 = vmatprep.subr.mxu0 0.0
    %1049 = vmatpush1.msra.mxu0 0.0
    %1050 = vmatprep.subr.mxu0 0.0
    %1051 = vmatpush1.msra.mxu0 0.0
    %1052 = vmatprep.subr.mxu0 0.0
    %1053 = vmatpush1.msra.mxu0 0.0
    %1054 = vmatprep.subr.mxu0 0.0
    %1055 = vmatpush1.msra.mxu0 0.0
    %1056 = vmatprep.subr.mxu0 0.0
    %1057 = vmatpush1.msra.mxu0 0.0
    %1058 = vmatprep.subr.mxu0 0.0
    %1059 = vmatpush1.msra.mxu0 %v527
    %1060 = vmatprep.subr.mxu0 0.0
    %1061 = vmatpush2.msra.mxu0 0.0
    %1062 = vmatprep.subr.mxu0 0.0
    %1063 = vmatpush2.msra.mxu0 0.0
    %1064 = vmatprep.subr.mxu0 0.0
    %1065 = vmatpush2.msra.mxu0 0.0
    %1066 = vmatprep.subr.mxu0 0.0
    %1067 = vmatpush2.msra.mxu0 0.0
    %1068 = vmatprep.subr.mxu0 0.0
    %1069 = vmatpush2.msra.mxu0 0.0
    %1070 = vmatprep.subr.mxu0 0.0
    %1071 = vmatpush2.msra.mxu0 0.0
    %1072 = vmatprep.subr.mxu0 0.0
    %1073 = vmatpush2.msra.mxu0 0.0
    %1074 = vmatprep.subr.mxu0 0.0
    %1075 = vmatpush2.msra.mxu0 0.0
    %1076 = vmatprep.subr.mxu0 0.0
    %1077 = vmatpush2.msra.mxu0 0.0
    %1078 = vmatprep.subr.mxu0 0.0
    %1079 = vmatpush2.msra.mxu0 0.0
    %1080 = vmatprep.subr.mxu0 0.0
    %1081 = vmatpush2.msra.mxu0 0.0
    %1082 = vmatprep.subr.mxu0 0.0
    %1083 = vmatpush2.msra.mxu0 0.0
    %1084 = vmatprep.subr.mxu0 0.0
    %1085 = vmatpush2.msra.mxu0 0.0
    %1086 = vmatprep.subr.mxu0 0.0
    %1087 = vmatpush2.msra.mxu0 0.0
    %1088 = vmatprep.subr.mxu0 0.0
    %1089 = vmatpush2.msra.mxu0 0.0
    %1090 = vmatprep.subr.mxu0 0.0
    %1091 = vmatpush2.msra.mxu0 0.0
    %1092 = vmatprep.mubr.f32.mxu0 0.0
    %1093 = vmatmul.mubr.f32.gmra.mxu0 %v1026
    %v1094 = vpop.f32.mrf.mxu0
    %v1095 = vadd.f32 %v949, %v1094
    %v1096 = vpop.f32.mrf.mxu0
    %1097 = vdwg.mxu0
    %v1098 = vld [vmem:[%s5] sm:$0x1]
    %v1100 = vlaneseq
    %v1101 = vshrl.u32 %v1100, 7
    %v1102 = vsub.s32 0, %v1101
    %v1103 = vrot.slane %v1098, %v1102
    %v1105 = vadd.f32 %v1022, %v1103
    %v1106 = vadd.f32 %v1095, %v1103
    %1107 = vst.msk [vmem:[#allocation10] sm:$0xff] %vm97, %v1105
    %1108 = vst.msk [vmem:[#allocation10 + $0x8] sm:$0xff] %vm97, %v1106
    // Predicated region
    $region42: #{tpu_custom_call.1} parent=1 // pred_check
      _
    $region43: #{tpu_custom_call.1} parent=1 // pred_check_branch
      %1110 = sbr.rel (0) target = $region45
    $region44: #{tpu_custom_call.1} parent=1 // pred_region
      %s1112 = ssub.s32 256, 256
      %1113 = vsyncadd [#allocation4], %s1112
      %s1114 = sshll.u32 [#allocation10], 4
      %s1115 = int_to_ptr.vmem [resolvable:$true] %s1114
      %1120 = dma.vmem_to_hbm [thread:$0]  %s1115, 256, %s6, [#allocation4], 128, 128, 8
    $region45: #{tpu_custom_call.1} parent=1 // pred_fallthru
      _
    // Predicated region
    $region46: #{tpu_custom_call.1} parent=1 // pred_check
      _
    $region47: #{tpu_custom_call.1} parent=1 // pred_check_branch
      %1122 = sbr.rel (0) target = $region49
    $region48: #{tpu_custom_call.1} parent=1 // pred_region
      %s1124 = ssub.s32 512, 512
      %1125 = vsyncadd [#allocation12], %s1124
      %s1126 = sshll.u32 [#allocation11], 4
      %s1127 = int_to_ptr.vmem [resolvable:$true] %s1126
      %1132 = dma.vmem_to_hbm [thread:$0]  %s1127, 512, %s7, [#allocation12], 128, 128, 8
    $region49: #{tpu_custom_call.1} parent=1 // pred_fallthru
      _
    // Predicated region
    $region50: #{tpu_custom_call.1} parent=1 // pred_check
      _
    $region51: #{tpu_custom_call.1} parent=1 // pred_check_branch
      %1134 = sbr.rel (0) target = $region53
    $region52: #{tpu_custom_call.1} parent=1 // pred_region
      %1135 = dma.done [#allocation4], 256
    $region53: #{tpu_custom_call.1} parent=1 // pred_fallthru
      _
    // Predicated region
    $region54: #{tpu_custom_call.1} parent=1 // pred_check
      _
    $region55: #{tpu_custom_call.1} parent=1 // pred_check_branch
      %1137 = sbr.rel (0) target = $region57
    $region56: #{tpu_custom_call.1} parent=1 // pred_region
      %1138 = dma.done [#allocation12], 512
    $region57: #{tpu_custom_call.1} parent=1 // pred_fallthru
      _
    %1139 = vsyncpa [#allocation3], 1
    %1140 = vsyncpa [#allocation6], 1
    %1141 = vsyncpa [#allocation9], 1
    %1142 = vsyncpa [#allocation4], 1
    %1143 = vsyncpa [#allocation12], 1

</llo_original>
